<compile_context>
chip_gen: v7x
topology: tpu7x:2x2x1
jax: 0.10.0
libtpu: 0.0.40
codegen_flags: <defaults>
</compile_context>

<pallas_src>
import functools

import jax
import jax.numpy as jnp
from jax.experimental import pallas as pl
from jax.experimental.pallas import tpu as pltpu


LRELU_SLOPE = 0.1


def _leaky_relu(x, slope):
    return jnp.where(x >= 0, x, slope * x)


def _make_fused_kernel(tT, K, dilation, pad2, halo, t_true, slope):
    """Fused layer kernel: out = conv2(lrelu(conv1(lrelu(x)))) + x  (one time tile)."""
    T1 = tT + 2 * pad2  # rows of the conv1 intermediate needed by this tile

    def kernel(x_ref, w1_ref, b1_ref, w2_ref, b2_ref, out_ref):
        ti = pl.program_id(1)

        # (tT + 2*halo, C) haloed input tile; zero-padded at sequence edges by
        # the wrapper, and lrelu(0) == 0, so activation-after-pad is exact.
        xa = _leaky_relu(x_ref[...].astype(jnp.float32), slope)

        # ---- conv1 (dilated), producing rows [t0 - pad2, t0 + tT + pad2) ----
        acc1 = jnp.dot(xa[0:T1, :], w1_ref[0], preferred_element_type=jnp.float32)
        for k in range(1, K):  # K is small & static -> unrolled MXU taps
            acc1 = acc1 + jnp.dot(xa[k * dilation:k * dilation + T1, :], w1_ref[k],
                                  preferred_element_type=jnp.float32)
        acc1 = acc1 + b1_ref[...]  # (1, C) broadcasts

        # ---- lrelu + zero rows that fall outside the true sequence ----------
        # (conv2 in PyTorch zero-pads the *conv1 output*, so extended rows that
        # we computed from the halo must be masked to zero to match exactly.)
        xt2 = _leaky_relu(acc1, slope)
        gpos = (ti * tT - pad2
                + jax.lax.broadcasted_iota(jnp.int32, (T1, xt2.shape[-1]), 0))
        xt2 = jnp.where((gpos >= 0) & (gpos < t_true), xt2, 0.0)

        # ---- conv2 (dilation 1) ---------------------------------------------
        acc2 = jnp.dot(xt2[0:tT, :], w2_ref[0], preferred_element_type=jnp.float32)
        for k in range(1, K):
            acc2 = acc2 + jnp.dot(xt2[k:k + tT, :], w2_ref[k],
                                  preferred_element_type=jnp.float32)
        acc2 = acc2 + b2_ref[...]

        # ---- residual from the center of the haloed input tile --------------
        res = x_ref[pl.ds(halo, tT), :].astype(jnp.float32)
        out_ref[...] = (acc2 + res).astype(out_ref.dtype)

    return kernel


def _fused_resblock_layer(x_nlc, w1_kio, b1, w2_kio, b2, dilation, slope, tT):
    """One ResBlock layer (conv1 + conv2 + residual) as a single pallas_call."""
    N, T, C = x_nlc.shape
    K = w1_kio.shape[0]
    pad1 = dilation * (K - 1) // 2     # == get_padding(K, dilation)
    pad2 = (K - 1) // 2                # conv2 always has dilation 1
    H = pad1 + pad2                    # total halo per side for the fused conv

    nT = pl.cdiv(T, tT)
    T_pad = nT * tT

    # Zero-pad time: H on the left, H plus the tile remainder on the right.
    xp = jnp.pad(x_nlc, ((0, 0), (H, H + (T_pad - T)), (0, 0)))

    # Materialize overlapping haloed tiles (overlap is only 2H rows per tile):
    # tile ti covers padded rows [ti*tT, ti*tT + tT + 2H).
    idx = jnp.arange(nT)[:, None] * tT + jnp.arange(tT + 2 * H)[None, :]
    x_tiles = jnp.take(xp, idx, axis=1)            # (N, nT, tT + 2H, C)
    # TODO(synk): express the halo directly with pl.Element offsets on the padded
    # input to avoid this wrapper-side gather copy.

    kernel = _make_fused_kernel(tT, K, dilation, pad2, H, T, slope)

    out = pl.pallas_call(
        kernel,
        out_shape=jax.ShapeDtypeStruct((N, nT, tT, C), x_nlc.dtype),
        grid=(N, nT),
        in_specs=[
            # haloed input tile, one per (batch, time-tile)
            pl.BlockSpec((pl.Squeezed(), pl.Squeezed(), tT + 2 * H, C),
                         lambda n, t: (n, t, 0, 0)),
            # weights / biases: grid-constant index maps -> stay resident in VMEM
            pl.BlockSpec((K, C, C), lambda n, t: (0, 0, 0)),
            pl.BlockSpec((1, C), lambda n, t: (0, 0)),
            pl.BlockSpec((K, C, C), lambda n, t: (0, 0, 0)),
            pl.BlockSpec((1, C), lambda n, t: (0, 0)),
        ],
        out_specs=pl.BlockSpec((pl.Squeezed(), pl.Squeezed(), tT, C),
                               lambda n, t: (n, t, 0, 0)),
        compiler_params=pltpu.CompilerParams(
            dimension_semantics=("parallel", "parallel")),
    )(x_tiles, w1_kio, b1.reshape(1, -1), w2_kio, b2.reshape(1, -1))

    return out.reshape(N, T_pad, C)[:, :T, :]


def res_block_forward(x_ncl, params1, params2, dilations, slope=LRELU_SLOPE,
                      time_tile=None):
    """Pallas implementation of ResBlock.forward.  x_ncl: (N, C, T) like PyTorch."""
    N, C, T = x_ncl.shape
    if time_tile is None:
        # Default: a multiple of 8 sublanes, capped so per-step VMEM stays small
        # even at production sizes (re-derive for v7x's 64 MiB VMEM if needed).
        time_tile = max(8, min(512, ((T + 7) // 8) * 8))

    x = jnp.transpose(x_ncl, (0, 2, 1))            # NCL -> NLC (channels on lanes)
    for (w1, b1), (w2, b2), d in zip(params1, params2, dilations):
        # PyTorch weight (C_out, C_in, K) -> per-tap (K, C_in, C_out) for right-matmul
        w1_kio = jnp.transpose(w1, (2, 1, 0))
        w2_kio = jnp.transpose(w2, (2, 1, 0))
        x = _fused_resblock_layer(x, w1_kio, b1, w2_kio, b2, d, slope, time_tile)
    return jnp.transpose(x, (0, 2, 1))             # NLC -> NCL


# ----------------------- deterministic parameter setup -----------------------

def init_weight_norm_conv(key, channels, kernel_size):
    """weight_norm(Conv1d): weight = g * v / ||v||, norm over (in, k) per out-channel."""
    kv, kg, kb = jax.random.split(key, 3)
    v = jax.random.normal(kv, (channels, channels, kernel_size), jnp.float32) * 0.1
    g = jax.random.uniform(kg, (channels, 1, 1), jnp.float32, minval=0.5, maxval=1.5)
    norm = jnp.sqrt(jnp.sum(v * v, axis=(1, 2), keepdims=True))
    w = g * v / norm                               # (C_out, C_in, K), PyTorch layout
    b = jax.random.normal(kb, (channels,), jnp.float32) * 0.1
    return w, b


# ----------------------------- pure-JAX reference -----------------------------

def _ref_conv1d(x_ncl, w, b, dilation):
    pad = dilation * (w.shape[-1] - 1) // 2
    out = jax.lax.conv_general_dilated(
        x_ncl, w, window_strides=(1,), padding=[(pad, pad)],
        rhs_dilation=(dilation,), dimension_numbers=("NCH", "OIH", "NCH"))
    return out + b[None, :, None]


def ref_forward(x, params1, params2, dilations, slope=LRELU_SLOPE):
    for (w1, b1), (w2, b2), d in zip(params1, params2, dilations):
        xt = jnp.where(x >= 0, x, slope * x)
        xt = _ref_conv1d(xt, w1, b1, d)
        xt = jnp.where(xt >= 0, xt, slope * xt)
        xt = _ref_conv1d(xt, w2, b2, 1)
        x = xt + x
    return x


if __name__ == "__main__":
    # Small ResBlock config: channels=8, kernel_size=3, dilation=(1, 3, 5).
    # T=40 with time_tile=16 exercises multi-tile grids, halo handling across
    # tile boundaries, and the non-divisible-T padding/slicing path.
    N, C, T = 2, 8, 40
    kernel_size = 3
    dilations = (1, 3, 5)

    key = jax.random.PRNGKey(0)
    kx, *pkeys = jax.random.split(key, 1 + 2 * len(dilations))
    x = jax.random.normal(kx, (N, C, T), jnp.float32)

    params1 = [init_weight_norm_conv(pkeys[i], C, kernel_size)
               for i in range(len(dilations))]
    params2 = [init_weight_norm_conv(pkeys[len(dilations) + i], C, kernel_size)
               for i in range(len(dilations))]

    fwd = functools.partial(res_block_forward, time_tile=16)
    out = jax.block_until_ready(fwd(x, params1, params2, dilations))

    ref = jax.block_until_ready(ref_forward(x, params1, params2, dilations))
    assert out.shape == (N, C, T)
    err = float(jnp.max(jnp.abs(out - ref)))
    assert jnp.allclose(out, ref, atol=1e-4, rtol=1e-4), err

    print("KERNEL_OK")
</pallas_src>

<mosaic_0001>
module attributes {stable_mosaic.version = 11 : i64} {
  func.func @kernel(%arg0: i32, %arg1: i32, %arg2: memref<1x1x20x8xf32, #tpu.memory_space<vmem>>, %arg3: memref<3x8x8xf32, #tpu.memory_space<vmem>>, %arg4: memref<1x8xf32, #tpu.memory_space<vmem>>, %arg5: memref<3x8x8xf32, #tpu.memory_space<vmem>>, %arg6: memref<1x8xf32, #tpu.memory_space<vmem>>, %arg7: memref<1x1x16x8xf32, #tpu.memory_space<vmem>>) attributes {dimension_semantics = [#tpu.dimension_semantics<parallel>, #tpu.dimension_semantics<parallel>], iteration_bounds = array<i64: 2, 3>, scalar_prefetch = 0 : i64, scratch_operands = 0 : i64, tpu.core_type = #tpu.core_type<tc>, window_params = [{transform_indices = @transform_0, window_bounds = array<i64: 1, 1, 20, 8>}, {pipeline_mode = #tpu.pipeline_mode<synchronous>, transform_indices = @transform_1, window_bounds = array<i64: 3, 8, 8>}, {pipeline_mode = #tpu.pipeline_mode<synchronous>, transform_indices = @transform_2, window_bounds = array<i64: 1, 8>}, {pipeline_mode = #tpu.pipeline_mode<synchronous>, transform_indices = @transform_3, window_bounds = array<i64: 3, 8, 8>}, {pipeline_mode = #tpu.pipeline_mode<synchronous>, transform_indices = @transform_4, window_bounds = array<i64: 1, 8>}, {transform_indices = @transform_5, window_bounds = array<i64: 1, 1, 16, 8>}]} {
    %c0 = arith.constant 0 : index
    %c0_0 = arith.constant 0 : index
    %c0_1 = arith.constant 0 : index
    %c0_2 = arith.constant 0 : index
    %0 = vector.load %arg2[%c0, %c0_0, %c0_1, %c0_2] : memref<1x1x20x8xf32, #tpu.memory_space<vmem>>, vector<1x1x20x8xf32>
    %1 = vector.shape_cast %0 : vector<1x1x20x8xf32> to vector<20x8xf32>
    %cst = arith.constant 0.000000e+00 : f32
    %2 = vector.broadcast %cst : f32 to vector<20x8xf32>
    %3 = arith.cmpf oge, %1, %2 : vector<20x8xf32>
    %cst_3 = arith.constant 1.000000e-01 : f32
    %4 = vector.broadcast %cst_3 : f32 to vector<20x8xf32>
    %5 = arith.mulf %4, %1 : vector<20x8xf32>
    %6 = arith.select %3, %1, %5 : vector<20x8xi1>, vector<20x8xf32>
    %7 = vector.extract_strided_slice %6 {offsets = [0, 0], sizes = [18, 8], strides = [1, 1]} : vector<20x8xf32> to vector<18x8xf32>
    %c0_4 = arith.constant 0 : index
    %c0_5 = arith.constant 0 : index
    %c0_6 = arith.constant 0 : index
    %8 = vector.load %arg3[%c0_4, %c0_5, %c0_6] : memref<3x8x8xf32, #tpu.memory_space<vmem>>, vector<1x8x8xf32>
    %9 = vector.shape_cast %8 : vector<1x8x8xf32> to vector<8x8xf32>
    %cst_7 = arith.constant dense<0.000000e+00> : vector<18x8xf32>
    %10 = tpu.matmul %7, %9, %cst_7 {dimension_numbers = #tpu.dot_dimension_numbers<[1], [0], [0], [1], [0, 0, 1, 1], [], []>} : vector<18x8xf32>, vector<8x8xf32>, vector<18x8xf32> -> vector<18x8xf32>
    %11 = vector.extract_strided_slice %6 {offsets = [1, 0], sizes = [18, 8], strides = [1, 1]} : vector<20x8xf32> to vector<18x8xf32>
    %c1 = arith.constant 1 : index
    %c0_8 = arith.constant 0 : index
    %c0_9 = arith.constant 0 : index
    %12 = vector.load %arg3[%c1, %c0_8, %c0_9] : memref<3x8x8xf32, #tpu.memory_space<vmem>>, vector<1x8x8xf32>
    %13 = vector.shape_cast %12 : vector<1x8x8xf32> to vector<8x8xf32>
    %cst_10 = arith.constant dense<0.000000e+00> : vector<18x8xf32>
    %14 = tpu.matmul %11, %13, %cst_10 {dimension_numbers = #tpu.dot_dimension_numbers<[1], [0], [0], [1], [0, 0, 1, 1], [], []>} : vector<18x8xf32>, vector<8x8xf32>, vector<18x8xf32> -> vector<18x8xf32>
    %15 = arith.addf %10, %14 : vector<18x8xf32>
    %16 = vector.extract_strided_slice %6 {offsets = [2, 0], sizes = [18, 8], strides = [1, 1]} : vector<20x8xf32> to vector<18x8xf32>
    %c2 = arith.constant 2 : index
    %c0_11 = arith.constant 0 : index
    %c0_12 = arith.constant 0 : index
    %17 = vector.load %arg3[%c2, %c0_11, %c0_12] : memref<3x8x8xf32, #tpu.memory_space<vmem>>, vector<1x8x8xf32>
    %18 = vector.shape_cast %17 : vector<1x8x8xf32> to vector<8x8xf32>
    %cst_13 = arith.constant dense<0.000000e+00> : vector<18x8xf32>
    %19 = tpu.matmul %16, %18, %cst_13 {dimension_numbers = #tpu.dot_dimension_numbers<[1], [0], [0], [1], [0, 0, 1, 1], [], []>} : vector<18x8xf32>, vector<8x8xf32>, vector<18x8xf32> -> vector<18x8xf32>
    %20 = arith.addf %15, %19 : vector<18x8xf32>
    %c0_14 = arith.constant 0 : index
    %c0_15 = arith.constant 0 : index
    %21 = vector.load %arg4[%c0_14, %c0_15] : memref<1x8xf32, #tpu.memory_space<vmem>>, vector<1x8xf32>
    %22 = vector.broadcast %21 : vector<1x8xf32> to vector<18x8xf32>
    %23 = arith.addf %20, %22 : vector<18x8xf32>
    %cst_16 = arith.constant 0.000000e+00 : f32
    %24 = vector.broadcast %cst_16 : f32 to vector<18x8xf32>
    %25 = arith.cmpf oge, %23, %24 : vector<18x8xf32>
    %cst_17 = arith.constant 1.000000e-01 : f32
    %26 = vector.broadcast %cst_17 : f32 to vector<18x8xf32>
    %27 = arith.mulf %26, %23 : vector<18x8xf32>
    %28 = arith.select %25, %23, %27 : vector<18x8xi1>, vector<18x8xf32>
    %c16_i32 = arith.constant 16 : i32
    %29 = arith.muli %arg1, %c16_i32 : i32
    %c1_i32 = arith.constant 1 : i32
    %30 = arith.subi %29, %c1_i32 : i32
    %31 = tpu.iota {dimensions = array<i32: 0>} : vector<18x8xi32>
    %32 = vector.broadcast %30 : i32 to vector<18x8xi32>
    %33 = arith.addi %32, %31 : vector<18x8xi32>
    %c0_i32 = arith.constant 0 : i32
    %34 = vector.broadcast %c0_i32 : i32 to vector<18x8xi32>
    %35 = arith.cmpi sge, %33, %34 : vector<18x8xi32>
    %c40_i32 = arith.constant 40 : i32
    %36 = vector.broadcast %c40_i32 : i32 to vector<18x8xi32>
    %37 = arith.cmpi slt, %33, %36 : vector<18x8xi32>
    %38 = arith.andi %35, %37 : vector<18x8xi1>
    %cst_18 = arith.constant 0.000000e+00 : f32
    %39 = vector.broadcast %cst_18 : f32 to vector<18x8xf32>
    %40 = arith.select %38, %28, %39 : vector<18x8xi1>, vector<18x8xf32>
    %41 = vector.extract_strided_slice %40 {offsets = [0, 0], sizes = [16, 8], strides = [1, 1]} : vector<18x8xf32> to vector<16x8xf32>
    %c0_19 = arith.constant 0 : index
    %c0_20 = arith.constant 0 : index
    %c0_21 = arith.constant 0 : index
    %42 = vector.load %arg5[%c0_19, %c0_20, %c0_21] : memref<3x8x8xf32, #tpu.memory_space<vmem>>, vector<1x8x8xf32>
    %43 = vector.shape_cast %42 : vector<1x8x8xf32> to vector<8x8xf32>
    %cst_22 = arith.constant dense<0.000000e+00> : vector<16x8xf32>
    %44 = tpu.matmul %41, %43, %cst_22 {dimension_numbers = #tpu.dot_dimension_numbers<[1], [0], [0], [1], [0, 0, 1, 1], [], []>} : vector<16x8xf32>, vector<8x8xf32>, vector<16x8xf32> -> vector<16x8xf32>
    %45 = vector.extract_strided_slice %40 {offsets = [1, 0], sizes = [16, 8], strides = [1, 1]} : vector<18x8xf32> to vector<16x8xf32>
    %c1_23 = arith.constant 1 : index
    %c0_24 = arith.constant 0 : index
    %c0_25 = arith.constant 0 : index
    %46 = vector.load %arg5[%c1_23, %c0_24, %c0_25] : memref<3x8x8xf32, #tpu.memory_space<vmem>>, vector<1x8x8xf32>
    %47 = vector.shape_cast %46 : vector<1x8x8xf32> to vector<8x8xf32>
    %cst_26 = arith.constant dense<0.000000e+00> : vector<16x8xf32>
    %48 = tpu.matmul %45, %47, %cst_26 {dimension_numbers = #tpu.dot_dimension_numbers<[1], [0], [0], [1], [0, 0, 1, 1], [], []>} : vector<16x8xf32>, vector<8x8xf32>, vector<16x8xf32> -> vector<16x8xf32>
    %49 = arith.addf %44, %48 : vector<16x8xf32>
    %50 = vector.extract_strided_slice %40 {offsets = [2, 0], sizes = [16, 8], strides = [1, 1]} : vector<18x8xf32> to vector<16x8xf32>
    %c2_27 = arith.constant 2 : index
    %c0_28 = arith.constant 0 : index
    %c0_29 = arith.constant 0 : index
    %51 = vector.load %arg5[%c2_27, %c0_28, %c0_29] : memref<3x8x8xf32, #tpu.memory_space<vmem>>, vector<1x8x8xf32>
    %52 = vector.shape_cast %51 : vector<1x8x8xf32> to vector<8x8xf32>
    %cst_30 = arith.constant dense<0.000000e+00> : vector<16x8xf32>
    %53 = tpu.matmul %50, %52, %cst_30 {dimension_numbers = #tpu.dot_dimension_numbers<[1], [0], [0], [1], [0, 0, 1, 1], [], []>} : vector<16x8xf32>, vector<8x8xf32>, vector<16x8xf32> -> vector<16x8xf32>
    %54 = arith.addf %49, %53 : vector<16x8xf32>
    %c0_31 = arith.constant 0 : index
    %c0_32 = arith.constant 0 : index
    %55 = vector.load %arg6[%c0_31, %c0_32] : memref<1x8xf32, #tpu.memory_space<vmem>>, vector<1x8xf32>
    %56 = vector.broadcast %55 : vector<1x8xf32> to vector<16x8xf32>
    %57 = arith.addf %54, %56 : vector<16x8xf32>
    %c0_33 = arith.constant 0 : index
    %c0_34 = arith.constant 0 : index
    %c2_35 = arith.constant 2 : index
    %c0_36 = arith.constant 0 : index
    %58 = vector.load %arg2[%c0_33, %c0_34, %c2_35, %c0_36] : memref<1x1x20x8xf32, #tpu.memory_space<vmem>>, vector<1x1x16x8xf32>
    %59 = vector.shape_cast %58 : vector<1x1x16x8xf32> to vector<16x8xf32>
    %60 = arith.addf %57, %59 : vector<16x8xf32>
    %c0_37 = arith.constant 0 : index
    %c0_38 = arith.constant 0 : index
    %c0_39 = arith.constant 0 : index
    %c0_40 = arith.constant 0 : index
    %61 = vector.load %arg7[%c0_37, %c0_38, %c0_39, %c0_40] : memref<1x1x16x8xf32, #tpu.memory_space<vmem>>, vector<1x1x16x8xf32>
    %62 = vector.shape_cast %61 : vector<1x1x16x8xf32> to vector<16x8xf32>
    %63 = vector.shape_cast %60 : vector<16x8xf32> to vector<1x1x16x8xf32>
    tpu.vector_store %arg7[%c0_37, %c0_38, %c0_39, %c0_40], %63 {strides = array<i32>} : memref<1x1x16x8xf32, #tpu.memory_space<vmem>>, vector<1x1x16x8xf32>,
    return
  }
  func.func @transform_0(%arg0: i32, %arg1: i32) -> (i32, i32, i32, i32) {
    %c0_i32 = arith.constant 0 : i32
    %c0_i32_0 = arith.constant 0 : i32
    %c0_i32_1 = arith.constant 0 : i32
    return %arg0, %arg1, %c0_i32, %c0_i32_0 : i32, i32, i32, i32
  }
  func.func @transform_1(%arg0: i32, %arg1: i32) -> (i32, i32, i32) {
    %c0_i32 = arith.constant 0 : i32
    %c0_i32_0 = arith.constant 0 : i32
    %c0_i32_1 = arith.constant 0 : i32
    %c0_i32_2 = arith.constant 0 : i32
    return %c0_i32, %c0_i32_0, %c0_i32_1 : i32, i32, i32
  }
  func.func @transform_2(%arg0: i32, %arg1: i32) -> (i32, i32) {
    %c0_i32 = arith.constant 0 : i32
    %c0_i32_0 = arith.constant 0 : i32
    %c0_i32_1 = arith.constant 0 : i32
    return %c0_i32, %c0_i32_0 : i32, i32
  }
  func.func @transform_3(%arg0: i32, %arg1: i32) -> (i32, i32, i32) {
    %c0_i32 = arith.constant 0 : i32
    %c0_i32_0 = arith.constant 0 : i32
    %c0_i32_1 = arith.constant 0 : i32
    %c0_i32_2 = arith.constant 0 : i32
    return %c0_i32, %c0_i32_0, %c0_i32_1 : i32, i32, i32
  }
  func.func @transform_4(%arg0: i32, %arg1: i32) -> (i32, i32) {
    %c0_i32 = arith.constant 0 : i32
    %c0_i32_0 = arith.constant 0 : i32
    %c0_i32_1 = arith.constant 0 : i32
    return %c0_i32, %c0_i32_0 : i32, i32
  }
  func.func @transform_5(%arg0: i32, %arg1: i32) -> (i32, i32, i32, i32) {
    %c0_i32 = arith.constant 0 : i32
    %c0_i32_0 = arith.constant 0 : i32
    %c0_i32_1 = arith.constant 0 : i32
    return %arg0, %arg1, %c0_i32, %c0_i32_0 : i32, i32, i32, i32
  }
}

</mosaic_0001>

<llo_original>
// kernel: tpu_custom_call.1
$region0: #{tpu_custom_call.1}
  #allocation0 [shape = 'u32[]', space=smem, size = 0x4, offset = 0x4, fixed_abs, tag = 'smem constant byte address 0x4 - core index']
  #allocation1 [shape = 'u32[144,128]{1,0:T(1,128)}', space=vmem, size = 0x12000, scoped, tag = 'internal scratch']
  %s0 = inlined_call_operand.vmem [shape: f32[2,3,20,8], index: 0, kind: input, shape index: {}]
  %s1 = inlined_call_operand.vmem [shape: f32[3,8,8], index: 1, kind: input, shape index: {}]
  %s2 = inlined_call_operand.vmem [shape: f32[1,8], index: 2, kind: input, shape index: {}]
  %s3 = inlined_call_operand.vmem [shape: f32[3,8,8], index: 3, kind: input, shape index: {}]
  %s4 = inlined_call_operand.vmem [shape: f32[1,8], index: 4, kind: input, shape index: {}]
  %s5 = inlined_call_operand.vmem [shape: f32[2,3,16,8], index: 5, kind: output, shape index: {}]
  %s6 = sld [smem:[#allocation0]]
  $region53: #{tpu_custom_call.1} parent=0
    _
  %s8 = ssub.s32 1, %s6
  %s9 = scalar_select 0, %s8, %s6
  loop: start=0, step=1, limit=8
  $region2: #{tpu_custom_call.1} parent=0 // loop_pre_header
    _
  $region3: #{tpu_custom_call.1} parent=0 // loop_header
    %s11 = sphi 0, %s15
    %p12 = scmp.ge.s32.totalorder %s11, 8
    %s18 = sphi 0, %s30
    %s19 = sphi 0, %s26
    %s20 = sphi 0, %s18
    %s21 = sphi 0, %s19
    %s22 = sphi 0, %s20
    %s23 = sphi 0, %s21
    %s35 = sphi 0, %s37
    %s38 = sphi 0, %s35
    %s39 = sphi 0, %s38
    %s55 = sphi 0, %s39
    %s59 = sphi 0, %s59
    %s61 = sphi 0, %s59
    %s62 = sphi 0, %s61
    %s76 = sphi 0, %s62
    %s80 = sphi 0, %s80
    %s82 = sphi 0, %s80
    %s83 = sphi 0, %s82
    %s97 = sphi 0, %s83
    %s101 = sphi 0, %s101
    %s103 = sphi 0, %s101
    %s104 = sphi 0, %s103
    %s118 = sphi 0, %s104
    %s122 = sphi 0, %s122
    %s124 = sphi 0, %s122
    %s125 = sphi 0, %s124
    %s139 = sphi 0, %s125
    %s147 = sphi 0, %s149
    %s150 = sphi 0, %s147
    %s151 = sphi 0, %s150
    %s167 = sphi 0, %s151
  $region4: #{tpu_custom_call.1} parent=0 // loop_header_branch
    %14 = sbr.rel (%p12) target = $region8
  $region5: #{tpu_custom_call.1} parent=0 // loop_body
    %s16 = ssub.s32 %s11, 1
    %s17 = ssub.s32 %s11, 2
    %s24 = sadd.s32 1, %s19
    %p25 = scmp.ge.s32.totalorder %s24, 3
    %s26 = scalar_select %p25, 0, %s24
    %s27 = sadd.s32 1, %s18
    %s28 = scalar_select %p25, %s27, %s18
    %p29 = scmp.ge.s32.totalorder %s28, 2
    %s30 = scalar_select %p29, 0, %s28
    %s31 = ssub.s32 %s18, %s30
    %s32 = ssub.s32 %s19, %s26
    %s33 = sor.u32 %s31, %s32
    %p34 = scmp.eq.s32.totalorder %s33, 0
    %s36 = sadd.s32 %s35, 1
    %s37 = scalar_select %p34, %s35, %s36
    %p40 = pneg %p34
    %p41 = scmp.eq.s32.totalorder %s11, 5
    %p42 = por %p40, %p41
    %p43 = scmp.ne.s32.totalorder %s35, %s38
    %p44 = scmp.eq.s32.totalorder %s11, 0
    %p45 = por %p43, %p44
    %p46 = scmp.ne.s32.totalorder %s35, %s38
    %p47 = scmp.eq.s32.totalorder %s16, 5
    %p48 = por %p46, %p47
    %p49 = scmp.ne.s32.totalorder %s38, %s39
    %p50 = scmp.eq.s32.totalorder %s16, 0
    %p51 = por %p49, %p50
    %p52 = scmp.ne.s32.totalorder %s38, %s39
    %p53 = scmp.eq.s32.totalorder %s17, 5
    %p54 = por %p52, %p53
    %p56 = scmp.ne.s32.totalorder %s39, %s55
    %p57 = scmp.eq.s32.totalorder %s17, 0
    %p58 = por %p56, %p57
    %s60 = sadd.s32 %s59, 1
    %p63 = scmp.eq.s32.totalorder %s11, 5
    %p64 = scmp.ne.s32.totalorder %s59, %s61
    %p65 = scmp.eq.s32.totalorder %s11, 0
    %p66 = por %p64, %p65
    %p67 = scmp.ne.s32.totalorder %s59, %s61
    %p68 = scmp.eq.s32.totalorder %s16, 5
    %p69 = por %p67, %p68
    %p70 = scmp.ne.s32.totalorder %s61, %s62
    %p71 = scmp.eq.s32.totalorder %s16, 0
    %p72 = por %p70, %p71
    %p73 = scmp.ne.s32.totalorder %s61, %s62
    %p74 = scmp.eq.s32.totalorder %s17, 5
    %p75 = por %p73, %p74
    %p77 = scmp.ne.s32.totalorder %s62, %s76
    %p78 = scmp.eq.s32.totalorder %s17, 0
    %p79 = por %p77, %p78
    %s81 = sadd.s32 %s80, 1
    %p84 = scmp.eq.s32.totalorder %s11, 5
    %p85 = scmp.ne.s32.totalorder %s80, %s82
    %p86 = scmp.eq.s32.totalorder %s11, 0
    %p87 = por %p85, %p86
    %p88 = scmp.ne.s32.totalorder %s80, %s82
    %p89 = scmp.eq.s32.totalorder %s16, 5
    %p90 = por %p88, %p89
    %p91 = scmp.ne.s32.totalorder %s82, %s83
    %p92 = scmp.eq.s32.totalorder %s16, 0
    %p93 = por %p91, %p92
    %p94 = scmp.ne.s32.totalorder %s82, %s83
    %p95 = scmp.eq.s32.totalorder %s17, 5
    %p96 = por %p94, %p95
    %p98 = scmp.ne.s32.totalorder %s83, %s97
    %p99 = scmp.eq.s32.totalorder %s17, 0
    %p100 = por %p98, %p99
    %s102 = sadd.s32 %s101, 1
    %p105 = scmp.eq.s32.totalorder %s11, 5
    %p106 = scmp.ne.s32.totalorder %s101, %s103
    %p107 = scmp.eq.s32.totalorder %s11, 0
    %p108 = por %p106, %p107
    %p109 = scmp.ne.s32.totalorder %s101, %s103
    %p110 = scmp.eq.s32.totalorder %s16, 5
    %p111 = por %p109, %p110
    %p112 = scmp.ne.s32.totalorder %s103, %s104
    %p113 = scmp.eq.s32.totalorder %s16, 0
    %p114 = por %p112, %p113
    %p115 = scmp.ne.s32.totalorder %s103, %s104
    %p116 = scmp.eq.s32.totalorder %s17, 5
    %p117 = por %p115, %p116
    %p119 = scmp.ne.s32.totalorder %s104, %s118
    %p120 = scmp.eq.s32.totalorder %s17, 0
    %p121 = por %p119, %p120
    %s123 = sadd.s32 %s122, 1
    %p126 = scmp.eq.s32.totalorder %s11, 5
    %p127 = scmp.ne.s32.totalorder %s122, %s124
    %p128 = scmp.eq.s32.totalorder %s11, 0
    %p129 = por %p127, %p128
    %p130 = scmp.ne.s32.totalorder %s122, %s124
    %p131 = scmp.eq.s32.totalorder %s16, 5
    %p132 = por %p130, %p131
    %p133 = scmp.ne.s32.totalorder %s124, %s125
    %p134 = scmp.eq.s32.totalorder %s16, 0
    %p135 = por %p133, %p134
    %p136 = scmp.ne.s32.totalorder %s124, %s125
    %p137 = scmp.eq.s32.totalorder %s17, 5
    %p138 = por %p136, %p137
    %p140 = scmp.ne.s32.totalorder %s125, %s139
    %p141 = scmp.eq.s32.totalorder %s17, 0
    %p142 = por %p140, %p141
    %s143 = ssub.s32 %s18, %s30
    %s144 = ssub.s32 %s19, %s26
    %s145 = sor.u32 %s143, %s144
    %p146 = scmp.eq.s32.totalorder %s145, 0
    %s148 = sadd.s32 %s147, 1
    %s149 = scalar_select %p146, %s147, %s148
    %p152 = pneg %p146
    %p153 = scmp.eq.s32.totalorder %s11, 5
    %p154 = por %p152, %p153
    %p155 = scmp.ne.s32.totalorder %s147, %s150
    %p156 = scmp.eq.s32.totalorder %s11, 0
    %p157 = por %p155, %p156
    %p158 = scmp.ne.s32.totalorder %s147, %s150
    %p159 = scmp.eq.s32.totalorder %s16, 5
    %p160 = por %p158, %p159
    %p161 = scmp.ne.s32.totalorder %s150, %s151
    %p162 = scmp.eq.s32.totalorder %s16, 0
    %p163 = por %p161, %p162
    %p164 = scmp.ne.s32.totalorder %s150, %s151
    %p165 = scmp.eq.s32.totalorder %s17, 5
    %p166 = por %p164, %p165
    %p168 = scmp.ne.s32.totalorder %s151, %s167
    %p169 = scmp.eq.s32.totalorder %s17, 0
    %p170 = por %p168, %p169
    %p171 = scmp.le.s32.totalorder 1, %s11
    %p172 = scmp.lt.s32.totalorder %s11, 7
    %p173 = pnand %p171, %p172
    %p174 = pneg %p173
    // Predicated region
    $region9: #{tpu_custom_call.1} parent=5 // pred_check
      _
    $region10: #{tpu_custom_call.1} parent=5 // pred_check_branch
      %176 = sbr.rel (%p173) target = $region12
    $region11: #{tpu_custom_call.1} parent=5 // pred_region
      %s177 = ssub.s32 %s11, 1
      // Predicated region
      $region13: #{tpu_custom_call.1} parent=11 // pred_check
        %p178 = pneg %p72
      $region14: #{tpu_custom_call.1} parent=11 // pred_check_branch
        %180 = sbr.rel (%p178) target = $region16
      $region15: #{tpu_custom_call.1} parent=11 // pred_region
        _
      $region16: #{tpu_custom_call.1} parent=11 // pred_fallthru
        _
      // Predicated region
      $region17: #{tpu_custom_call.1} parent=11 // pred_check
        %p181 = pneg %p93
      $region18: #{tpu_custom_call.1} parent=11 // pred_check_branch
        %183 = sbr.rel (%p181) target = $region20
      $region19: #{tpu_custom_call.1} parent=11 // pred_region
        _
      $region20: #{tpu_custom_call.1} parent=11 // pred_fallthru
        _
      // Predicated region
      $region21: #{tpu_custom_call.1} parent=11 // pred_check
        %p184 = pneg %p114
      $region22: #{tpu_custom_call.1} parent=11 // pred_check_branch
        %186 = sbr.rel (%p184) target = $region24
      $region23: #{tpu_custom_call.1} parent=11 // pred_region
        _
      $region24: #{tpu_custom_call.1} parent=11 // pred_fallthru
        _
      // Predicated region
      $region25: #{tpu_custom_call.1} parent=11 // pred_check
        %p187 = pneg %p135
      $region26: #{tpu_custom_call.1} parent=11 // pred_check_branch
        %189 = sbr.rel (%p187) target = $region28
      $region27: #{tpu_custom_call.1} parent=11 // pred_region
        _
      $region28: #{tpu_custom_call.1} parent=11 // pred_fallthru
        _
    $region12: #{tpu_custom_call.1} parent=5 // pred_fallthru
      _
    %p190 = scmp.lt.s32.totalorder %s11, 6
    // Predicated region
    $region29: #{tpu_custom_call.1} parent=5 // pred_check
      %p191 = pneg %p190
    $region30: #{tpu_custom_call.1} parent=5 // pred_check_branch
      %193 = sbr.rel (%p191) target = $region32
    $region31: #{tpu_custom_call.1} parent=5 // pred_region
      // Predicated region
      $region33: #{tpu_custom_call.1} parent=31 // pred_check
        %p194 = pneg %p45
      $region34: #{tpu_custom_call.1} parent=31 // pred_check_branch
        %196 = sbr.rel (%p194) target = $region36
      $region35: #{tpu_custom_call.1} parent=31 // pred_region
        %p197 = scmp.lt.s32.totalorder %s18, 1
        %s198 = scalar_select %p197, %s18, 1
        %p199 = scmp.lt.s32.totalorder %s19, 2
        %s200 = scalar_select %p199, %s19, 2
        %s201 = smul.addr %s200, 3
        %s202 = smul.addr %s198, 9
        %s203 = sadd.s32 %s201, %s202
        %s204 = smul.addr %s203, 8
        %s205 = scalar_lea.vmem %s0, %s204
      $region36: #{tpu_custom_call.1} parent=31 // pred_fallthru
        _
    $region32: #{tpu_custom_call.1} parent=5 // pred_fallthru
      _
    %p206 = scmp.le.s32.totalorder 1, %s11
    %p207 = scmp.lt.s32.totalorder %s11, 7
    %p208 = pnand %p206, %p207
    %p209 = pneg %p208
    // Predicated region
    $region37: #{tpu_custom_call.1} parent=5 // pred_check
      _
    $region38: #{tpu_custom_call.1} parent=5 // pred_check_branch
      %211 = sbr.rel (%p208) target = $region40
    $region39: #{tpu_custom_call.1} parent=5 // pred_region
      %s212 = ssub.s32 %s11, 1
      %p213 = scmp.lt.s32.totalorder %s20, 1
      %s214 = scalar_select %p213, %s20, 1
      %p215 = scmp.lt.s32.totalorder %s21, 2
      %s216 = scalar_select %p215, %s21, 2
      %s217 = smul.addr %s216, 3
      %s218 = smul.addr %s214, 9
      %s219 = sadd.s32 %s217, %s218
      %s220 = smul.addr %s219, 8
      %s221 = scalar_lea.vmem %s0, %s220
      %p222 = pneg %p51
      %p223 = pneg %p48
      %p224 = pneg %p72
      %p225 = pneg %p69
      %p226 = pneg %p93
      %p227 = pneg %p90
      %p228 = pneg %p114
      %p229 = pneg %p111
      %p230 = pneg %p135
      %p231 = pneg %p132
      %p232 = pneg %p163
      %p233 = pneg %p160
      %p234 = scmp.lt.s32.totalorder %s20, 1
      %s235 = scalar_select %p234, %s20, 1
      %p236 = scmp.lt.s32.totalorder %s21, 2
      %s237 = scalar_select %p236, %s21, 2
      %s238 = smul.addr %s237, 2
      %s239 = smul.addr %s235, 6
      %s240 = sadd.s32 %s238, %s239
      %s241 = smul.addr %s240, 8
      %s242 = scalar_lea.vmem %s5, %s241
      %p243 = scmp.lt.s32.totalorder %s20, 1
      %s244 = scalar_select %p243, %s20, 1
      %p245 = scmp.lt.s32.totalorder %s21, 2
      %s246 = scalar_select %p245, %s21, 2
      %s247 = smul.addr %s246, 3
      %s248 = smul.addr %s244, 9
      %s249 = sadd.s32 %s247, %s248
      %s250 = smul.addr %s249, 8
      %s251 = scalar_lea.vmem %s0, %s250
      %p252 = scmp.lt.s32.totalorder %s20, 1
      %s253 = scalar_select %p252, %s20, 1
      %p254 = scmp.lt.s32.totalorder %s21, 2
      %s255 = scalar_select %p254, %s21, 2
      %s256 = smul.addr %s255, 2
      %s257 = smul.addr %s253, 6
      %s258 = sadd.s32 %s256, %s257
      %s259 = smul.addr %s258, 8
      %s260 = scalar_lea.vmem %s5, %s259
      %v261 = vld [vmem:[%s251] sm:$0xff]
      %v262 = vld [vmem:[%s251 + $0x8] sm:$0xff]
      %v263 = vld [vmem:[%s251 + $0x10] sm:$0xf]
      %vm264 = vcmp.ge.f32.partialorder %v261, 0.0
      %vm265 = vcmp.ge.f32.partialorder %v262, 0.0
      %vm266 = vcmp.ge.f32.partialorder %v263, 0.0
      %v267 = vmul.f32 %v261, 0.1
      %v268 = vmul.f32 %v262, 0.1
      %v269 = vmul.f32 %v263, 0.1
      %v270 = vsel %vm264, %v261, %v267
      %v271 = vsel %vm265, %v262, %v268
      %v272 = vsel %vm266, %v263, %v269
      %v273 = vld [vmem:[%s1] sm:$0xff]
      %s274 = scalar_lea.vmem %s1, 8
      %v275 = vld [vmem:[%s274] sm:$0xff]
      %vm279 = vcmask 1046528
      %v280 = vrot.slane %v270, 1
      %v281 = vrot.slane %v271, 1
      %v282 = vsel %vm279, %v280, %v281
      %v283 = vrot.slane %v272, 1
      %v284 = vsel %vm279, %v281, %v283
      %vm285 = vcmask 64512
      %v286 = vsel %vm285, %v282, 0
      %v288 = vsel %vm285, %v284, 0
      %v290 = vsel %vm285, %v283, 0
      %292 = vmatprep.subr.mxu0 0.0
      %293 = vmatpush1.msra.mxu0 %v275
      %294 = vmatprep.subr.mxu0 0.0
      %295 = vmatpush1.msra.mxu0 0.0
      %296 = vmatprep.subr.mxu0 0.0
      %297 = vmatpush1.msra.mxu0 0.0
      %298 = vmatprep.subr.mxu0 0.0
      %299 = vmatpush1.msra.mxu0 0.0
      %300 = vmatprep.subr.mxu0 0.0
      %301 = vmatpush1.msra.mxu0 0.0
      %302 = vmatprep.subr.mxu0 0.0
      %303 = vmatpush1.msra.mxu0 0.0
      %304 = vmatprep.subr.mxu0 0.0
      %305 = vmatpush1.msra.mxu0 0.0
      %306 = vmatprep.subr.mxu0 0.0
      %307 = vmatpush1.msra.mxu0 0.0
      %308 = vmatprep.subr.mxu0 0.0
      %309 = vmatpush1.msra.mxu0 0.0
      %310 = vmatprep.subr.mxu0 0.0
      %311 = vmatpush1.msra.mxu0 0.0
      %312 = vmatprep.subr.mxu0 0.0
      %313 = vmatpush1.msra.mxu0 0.0
      %314 = vmatprep.subr.mxu0 0.0
      %315 = vmatpush1.msra.mxu0 0.0
      %316 = vmatprep.subr.mxu0 0.0
      %317 = vmatpush1.msra.mxu0 0.0
      %318 = vmatprep.subr.mxu0 0.0
      %319 = vmatpush1.msra.mxu0 0.0
      %320 = vmatprep.subr.mxu0 0.0
      %321 = vmatpush1.msra.mxu0 0.0
      %322 = vmatprep.subr.mxu0 0.0
      %323 = vmatpush1.msra.mxu0 0.0
      %324 = vmatprep.subr.mxu0 0.0
      %325 = vmatpush1.msra.mxu0 0.0
      %326 = vmatprep.subr.mxu0 0.0
      %327 = vmatpush1.msra.mxu0 0.0
      %328 = vmatprep.subr.mxu0 0.0
      %329 = vmatpush1.msra.mxu0 0.0
      %330 = vmatprep.subr.mxu0 0.0
      %331 = vmatpush1.msra.mxu0 0.0
      %332 = vmatprep.subr.mxu0 0.0
      %333 = vmatpush1.msra.mxu0 0.0
      %334 = vmatprep.subr.mxu0 0.0
      %335 = vmatpush1.msra.mxu0 0.0
      %336 = vmatprep.subr.mxu0 0.0
      %337 = vmatpush1.msra.mxu0 0.0
      %338 = vmatprep.subr.mxu0 0.0
      %339 = vmatpush1.msra.mxu0 0.0
      %340 = vmatprep.subr.mxu0 0.0
      %341 = vmatpush1.msra.mxu0 0.0
      %342 = vmatprep.subr.mxu0 0.0
      %343 = vmatpush1.msra.mxu0 0.0
      %344 = vmatprep.subr.mxu0 0.0
      %345 = vmatpush1.msra.mxu0 0.0
      %346 = vmatprep.subr.mxu0 0.0
      %347 = vmatpush1.msra.mxu0 0.0
      %348 = vmatprep.subr.mxu0 0.0
      %349 = vmatpush1.msra.mxu0 0.0
      %350 = vmatprep.subr.mxu0 0.0
      %351 = vmatpush1.msra.mxu0 0.0
      %352 = vmatprep.subr.mxu0 0.0
      %353 = vmatpush1.msra.mxu0 0.0
      %354 = vmatprep.subr.mxu0 0.0
      %355 = vmatpush1.msra.mxu0 0.0
      %356 = vmatprep.mubr.f32.mxu0 0.0
      %357 = vmatmul.mubr.f32.gmra.mrb[0].mxu0 %v286
      %v358 = vpop.f32.mrb[0].mxu0
      %v359 = vadd.f32 0.0, %v358
      %v360 = vpop.f32.mrb[0].mxu0
      %361 = vmatprep.mubr.f32.mxu0 0.0
      %362 = vmatmul.mubr.f32.gmra.mrb[0].mxu0 %v288
      %v363 = vpop.f32.mrb[0].mxu0
      %v364 = vadd.f32 0.0, %v363
      %v365 = vpop.f32.mrb[0].mxu0
      %366 = vmatprep.mubr.f32.mxu0 0.0
      %367 = vmatmul.mubr.f32.gmra.mrb[0].mxu0 %v290
      %v368 = vpop.f32.mrb[0].mxu0
      %v369 = vadd.f32 0.0, %v368
      %v370 = vpop.f32.mrb[0].mxu0
      %371 = vdwg.mxu0
      %v372 = vsel %vm285, %v270, 0
      %v374 = vsel %vm285, %v271, 0
      %v376 = vsel %vm285, %v272, 0
      %378 = vmatprep.subr.mxu0 0.0
      %379 = vmatpush1.msra.mxu0 %v273
      %380 = vmatprep.subr.mxu0 0.0
      %381 = vmatpush1.msra.mxu0 0.0
      %382 = vmatprep.subr.mxu0 0.0
      %383 = vmatpush1.msra.mxu0 0.0
      %384 = vmatprep.subr.mxu0 0.0
      %385 = vmatpush1.msra.mxu0 0.0
      %386 = vmatprep.subr.mxu0 0.0
      %387 = vmatpush1.msra.mxu0 0.0
      %388 = vmatprep.subr.mxu0 0.0
      %389 = vmatpush1.msra.mxu0 0.0
      %390 = vmatprep.subr.mxu0 0.0
      %391 = vmatpush1.msra.mxu0 0.0
      %392 = vmatprep.subr.mxu0 0.0
      %393 = vmatpush1.msra.mxu0 0.0
      %394 = vmatprep.subr.mxu0 0.0
      %395 = vmatpush1.msra.mxu0 0.0
      %396 = vmatprep.subr.mxu0 0.0
      %397 = vmatpush1.msra.mxu0 0.0
      %398 = vmatprep.subr.mxu0 0.0
      %399 = vmatpush1.msra.mxu0 0.0
      %400 = vmatprep.subr.mxu0 0.0
      %401 = vmatpush1.msra.mxu0 0.0
      %402 = vmatprep.subr.mxu0 0.0
      %403 = vmatpush1.msra.mxu0 0.0
      %404 = vmatprep.subr.mxu0 0.0
      %405 = vmatpush1.msra.mxu0 0.0
      %406 = vmatprep.subr.mxu0 0.0
      %407 = vmatpush1.msra.mxu0 0.0
      %408 = vmatprep.subr.mxu0 0.0
      %409 = vmatpush1.msra.mxu0 0.0
      %410 = vmatprep.subr.mxu0 0.0
      %411 = vmatpush1.msra.mxu0 0.0
      %412 = vmatprep.subr.mxu0 0.0
      %413 = vmatpush1.msra.mxu0 0.0
      %414 = vmatprep.subr.mxu0 0.0
      %415 = vmatpush1.msra.mxu0 0.0
      %416 = vmatprep.subr.mxu0 0.0
      %417 = vmatpush1.msra.mxu0 0.0
      %418 = vmatprep.subr.mxu0 0.0
      %419 = vmatpush1.msra.mxu0 0.0
      %420 = vmatprep.subr.mxu0 0.0
      %421 = vmatpush1.msra.mxu0 0.0
      %422 = vmatprep.subr.mxu0 0.0
      %423 = vmatpush1.msra.mxu0 0.0
      %424 = vmatprep.subr.mxu0 0.0
      %425 = vmatpush1.msra.mxu0 0.0
      %426 = vmatprep.subr.mxu0 0.0
      %427 = vmatpush1.msra.mxu0 0.0
      %428 = vmatprep.subr.mxu0 0.0
      %429 = vmatpush1.msra.mxu0 0.0
      %430 = vmatprep.subr.mxu0 0.0
      %431 = vmatpush1.msra.mxu0 0.0
      %432 = vmatprep.subr.mxu0 0.0
      %433 = vmatpush1.msra.mxu0 0.0
      %434 = vmatprep.subr.mxu0 0.0
      %435 = vmatpush1.msra.mxu0 0.0
      %436 = vmatprep.subr.mxu0 0.0
      %437 = vmatpush1.msra.mxu0 0.0
      %438 = vmatprep.subr.mxu0 0.0
      %439 = vmatpush1.msra.mxu0 0.0
      %440 = vmatprep.subr.mxu0 0.0
      %441 = vmatpush1.msra.mxu0 0.0
      %442 = vmatprep.mubr.f32.mxu0 0.0
      %443 = vmatmul.mubr.f32.gmra.mrb[0].mxu0 %v372
      %v444 = vpop.f32.mrb[0].mxu0
      %v445 = vadd.f32 %v359, %v444
      %v446 = vpop.f32.mrb[0].mxu0
      %447 = vmatprep.mubr.f32.mxu0 0.0
      %448 = vmatmul.mubr.f32.gmra.mrb[0].mxu0 %v374
      %v449 = vpop.f32.mrb[0].mxu0
      %v450 = vadd.f32 %v364, %v449
      %v451 = vpop.f32.mrb[0].mxu0
      %452 = vmatprep.mubr.f32.mxu0 0.0
      %453 = vmatmul.mubr.f32.gmra.mrb[0].mxu0 %v376
      %v454 = vpop.f32.mrb[0].mxu0
      %v455 = vadd.f32 %v369, %v454
      %v456 = vpop.f32.mrb[0].mxu0
      %457 = vdwg.mxu0
      %s458 = scalar_lea.vmem %s1, 16
      %v459 = vld [vmem:[%s458] sm:$0xff]
      %vm460 = vcmask 1045504
      %v461 = vrot.slane %v270, 2
      %v462 = vrot.slane %v271, 2
      %v463 = vsel %vm460, %v461, %v462
      %v464 = vrot.slane %v272, 2
      %v465 = vsel %vm460, %v462, %v464
      %v466 = vsel %vm285, %v463, 0
      %v468 = vsel %vm285, %v465, 0
      %v470 = vsel %vm285, %v464, 0
      %472 = vmatprep.subr.mxu0 0.0
      %473 = vmatpush1.msra.mxu0 %v459
      %474 = vmatprep.subr.mxu0 0.0
      %475 = vmatpush1.msra.mxu0 0.0
      %476 = vmatprep.subr.mxu0 0.0
      %477 = vmatpush1.msra.mxu0 0.0
      %478 = vmatprep.subr.mxu0 0.0
      %479 = vmatpush1.msra.mxu0 0.0
      %480 = vmatprep.subr.mxu0 0.0
      %481 = vmatpush1.msra.mxu0 0.0
      %482 = vmatprep.subr.mxu0 0.0
      %483 = vmatpush1.msra.mxu0 0.0
      %484 = vmatprep.subr.mxu0 0.0
      %485 = vmatpush1.msra.mxu0 0.0
      %486 = vmatprep.subr.mxu0 0.0
      %487 = vmatpush1.msra.mxu0 0.0
      %488 = vmatprep.subr.mxu0 0.0
      %489 = vmatpush1.msra.mxu0 0.0
      %490 = vmatprep.subr.mxu0 0.0
      %491 = vmatpush1.msra.mxu0 0.0
      %492 = vmatprep.subr.mxu0 0.0
      %493 = vmatpush1.msra.mxu0 0.0
      %494 = vmatprep.subr.mxu0 0.0
      %495 = vmatpush1.msra.mxu0 0.0
      %496 = vmatprep.subr.mxu0 0.0
      %497 = vmatpush1.msra.mxu0 0.0
      %498 = vmatprep.subr.mxu0 0.0
      %499 = vmatpush1.msra.mxu0 0.0
      %500 = vmatprep.subr.mxu0 0.0
      %501 = vmatpush1.msra.mxu0 0.0
      %502 = vmatprep.subr.mxu0 0.0
      %503 = vmatpush1.msra.mxu0 0.0
      %504 = vmatprep.subr.mxu0 0.0
      %505 = vmatpush1.msra.mxu0 0.0
      %506 = vmatprep.subr.mxu0 0.0
      %507 = vmatpush1.msra.mxu0 0.0
      %508 = vmatprep.subr.mxu0 0.0
      %509 = vmatpush1.msra.mxu0 0.0
      %510 = vmatprep.subr.mxu0 0.0
      %511 = vmatpush1.msra.mxu0 0.0
      %512 = vmatprep.subr.mxu0 0.0
      %513 = vmatpush1.msra.mxu0 0.0
      %514 = vmatprep.subr.mxu0 0.0
      %515 = vmatpush1.msra.mxu0 0.0
      %516 = vmatprep.subr.mxu0 0.0
      %517 = vmatpush1.msra.mxu0 0.0
      %518 = vmatprep.subr.mxu0 0.0
      %519 = vmatpush1.msra.mxu0 0.0
      %520 = vmatprep.subr.mxu0 0.0
      %521 = vmatpush1.msra.mxu0 0.0
      %522 = vmatprep.subr.mxu0 0.0
      %523 = vmatpush1.msra.mxu0 0.0
      %524 = vmatprep.subr.mxu0 0.0
      %525 = vmatpush1.msra.mxu0 0.0
      %526 = vmatprep.subr.mxu0 0.0
      %527 = vmatpush1.msra.mxu0 0.0
      %528 = vmatprep.subr.mxu0 0.0
      %529 = vmatpush1.msra.mxu0 0.0
      %530 = vmatprep.subr.mxu0 0.0
      %531 = vmatpush1.msra.mxu0 0.0
      %532 = vmatprep.subr.mxu0 0.0
      %533 = vmatpush1.msra.mxu0 0.0
      %534 = vmatprep.subr.mxu0 0.0
      %535 = vmatpush1.msra.mxu0 0.0
      %536 = vmatprep.mubr.f32.mxu0 0.0
      %537 = vmatmul.mubr.f32.gmra.mrb[0].mxu0 %v466
      %v538 = vpop.f32.mrb[0].mxu0
      %v539 = vadd.f32 0.0, %v538
      %v540 = vpop.f32.mrb[0].mxu0
      %541 = vmatprep.mubr.f32.mxu0 0.0
      %542 = vmatmul.mubr.f32.gmra.mrb[0].mxu0 %v468
      %v543 = vpop.f32.mrb[0].mxu0
      %v544 = vadd.f32 0.0, %v543
      %v545 = vpop.f32.mrb[0].mxu0
      %546 = vmatprep.mubr.f32.mxu0 0.0
      %547 = vmatmul.mubr.f32.gmra.mrb[0].mxu0 %v470
      %v548 = vpop.f32.mrb[0].mxu0
      %v549 = vadd.f32 0.0, %v548
      %v550 = vpop.f32.mrb[0].mxu0
      %551 = vdwg.mxu0
      %v552 = vadd.f32 %v445, %v539
      %v553 = vadd.f32 %v450, %v544
      %v554 = vadd.f32 %v455, %v549
      %v555 = vld [vmem:[%s2] sm:$0x1]
      %v557 = vlaneseq
      %v558 = vshrl.u32 %v557, 7
      %v559 = vsub.s32 0, %v558
      %v560 = vrot.slane %v555, %v559
      %v562 = vadd.f32 %v552, %v560
      %v563 = vadd.f32 %v553, %v560
      %v564 = vadd.f32 %v554, %v560
      %vm565 = vcmp.ge.f32.partialorder %v562, 0.0
      %vm566 = vcmp.ge.f32.partialorder %v563, 0.0
      %vm567 = vcmp.ge.f32.partialorder %v564, 0.0
      %v568 = vmul.f32 %v562, 0.1
      %v569 = vmul.f32 %v563, 0.1
      %v570 = vmul.f32 %v564, 0.1
      %v571 = vsel %vm565, %v562, %v568
      %v572 = vsel %vm566, %v563, %v569
      %v573 = vsel %vm567, %v564, %v570
      %s574 = smul.u32 %s21, 16
      %s575 = ssub.s32 %s574, 1
      %v576 = vlaneseq
      %v577 = vshrl.u32 %v576, 7
      %v578 = vadd.s32 %v577, 8
      %v579 = vadd.s32 %v577, 16
      %v580 = vstv %s575
      %v581 = vadd.s32 %v580, %v577
      %v582 = vadd.s32 %v580, %v578
      %v583 = vadd.s32 %v580, %v579
      %vm584 = vcmp.ge.s32.totalorder %v581, 0
      %vm585 = vcmp.ge.s32.totalorder %v582, 0
      %vm586 = vcmp.ge.s32.totalorder %v583, 0
      %vm587 = vcmp.lt.s32.totalorder %v581, 40
      %vm588 = vcmp.lt.s32.totalorder %v582, 40
      %vm589 = vcmp.lt.s32.totalorder %v583, 40
      %vm590 = vmand %vm584, %vm587
      %vm591 = vmand %vm585, %vm588
      %vm592 = vmand %vm586, %vm589
      %v593 = vsel %vm590, %v571, 0.0
      %v594 = vsel %vm591, %v572, 0.0
      %v595 = vsel %vm592, %v573, 0.0
      %v596 = vld [vmem:[%s3] sm:$0xff]
      %s597 = scalar_lea.vmem %s3, 8
      %v598 = vld [vmem:[%s597] sm:$0xff]
      %v602 = vrot.slane %v593, 1
      %v603 = vrot.slane %v594, 1
      %v604 = vsel %vm279, %v602, %v603
      %v605 = vrot.slane %v595, 1
      %v606 = vsel %vm279, %v603, %v605
      %v607 = vsel %vm285, %v604, 0
      %v609 = vsel %vm285, %v606, 0
      %611 = vmatprep.subr.mxu0 0.0
      %612 = vmatpush1.msra.mxu0 %v598
      %613 = vmatprep.subr.mxu0 0.0
      %614 = vmatpush1.msra.mxu0 0.0
      %615 = vmatprep.subr.mxu0 0.0
      %616 = vmatpush1.msra.mxu0 0.0
      %617 = vmatprep.subr.mxu0 0.0
      %618 = vmatpush1.msra.mxu0 0.0
      %619 = vmatprep.subr.mxu0 0.0
      %620 = vmatpush1.msra.mxu0 0.0
      %621 = vmatprep.subr.mxu0 0.0
      %622 = vmatpush1.msra.mxu0 0.0
      %623 = vmatprep.subr.mxu0 0.0
      %624 = vmatpush1.msra.mxu0 0.0
      %625 = vmatprep.subr.mxu0 0.0
      %626 = vmatpush1.msra.mxu0 0.0
      %627 = vmatprep.subr.mxu0 0.0
      %628 = vmatpush1.msra.mxu0 0.0
      %629 = vmatprep.subr.mxu0 0.0
      %630 = vmatpush1.msra.mxu0 0.0
      %631 = vmatprep.subr.mxu0 0.0
      %632 = vmatpush1.msra.mxu0 0.0
      %633 = vmatprep.subr.mxu0 0.0
      %634 = vmatpush1.msra.mxu0 0.0
      %635 = vmatprep.subr.mxu0 0.0
      %636 = vmatpush1.msra.mxu0 0.0
      %637 = vmatprep.subr.mxu0 0.0
      %638 = vmatpush1.msra.mxu0 0.0
      %639 = vmatprep.subr.mxu0 0.0
      %640 = vmatpush1.msra.mxu0 0.0
      %641 = vmatprep.subr.mxu0 0.0
      %642 = vmatpush1.msra.mxu0 0.0
      %643 = vmatprep.subr.mxu0 0.0
      %644 = vmatpush1.msra.mxu0 0.0
      %645 = vmatprep.subr.mxu0 0.0
      %646 = vmatpush1.msra.mxu0 0.0
      %647 = vmatprep.subr.mxu0 0.0
      %648 = vmatpush1.msra.mxu0 0.0
      %649 = vmatprep.subr.mxu0 0.0
      %650 = vmatpush1.msra.mxu0 0.0
      %651 = vmatprep.subr.mxu0 0.0
      %652 = vmatpush1.msra.mxu0 0.0
      %653 = vmatprep.subr.mxu0 0.0
      %654 = vmatpush1.msra.mxu0 0.0
      %655 = vmatprep.subr.mxu0 0.0
      %656 = vmatpush1.msra.mxu0 0.0
      %657 = vmatprep.subr.mxu0 0.0
      %658 = vmatpush1.msra.mxu0 0.0
      %659 = vmatprep.subr.mxu0 0.0
      %660 = vmatpush1.msra.mxu0 0.0
      %661 = vmatprep.subr.mxu0 0.0
      %662 = vmatpush1.msra.mxu0 0.0
      %663 = vmatprep.subr.mxu0 0.0
      %664 = vmatpush1.msra.mxu0 0.0
      %665 = vmatprep.subr.mxu0 0.0
      %666 = vmatpush1.msra.mxu0 0.0
      %667 = vmatprep.subr.mxu0 0.0
      %668 = vmatpush1.msra.mxu0 0.0
      %669 = vmatprep.subr.mxu0 0.0
      %670 = vmatpush1.msra.mxu0 0.0
      %671 = vmatprep.subr.mxu0 0.0
      %672 = vmatpush1.msra.mxu0 0.0
      %673 = vmatprep.subr.mxu0 0.0
      %674 = vmatpush1.msra.mxu0 0.0
      %675 = vmatprep.mubr.f32.mxu0 0.0
      %676 = vmatmul.mubr.f32.gmra.mrb[0].mxu0 %v607
      %v677 = vpop.f32.mrb[0].mxu0
      %v678 = vadd.f32 0.0, %v677
      %v679 = vpop.f32.mrb[0].mxu0
      %680 = vmatprep.mubr.f32.mxu0 0.0
      %681 = vmatmul.mubr.f32.gmra.mrb[0].mxu0 %v609
      %v682 = vpop.f32.mrb[0].mxu0
      %v683 = vadd.f32 0.0, %v682
      %v684 = vpop.f32.mrb[0].mxu0
      %685 = vdwg.mxu0
      %v686 = vsel %vm285, %v593, 0
      %v688 = vsel %vm285, %v594, 0
      %690 = vmatprep.subr.mxu0 0.0
      %691 = vmatpush1.msra.mxu0 %v596
      %692 = vmatprep.subr.mxu0 0.0
      %693 = vmatpush1.msra.mxu0 0.0
      %694 = vmatprep.subr.mxu0 0.0
      %695 = vmatpush1.msra.mxu0 0.0
      %696 = vmatprep.subr.mxu0 0.0
      %697 = vmatpush1.msra.mxu0 0.0
      %698 = vmatprep.subr.mxu0 0.0
      %699 = vmatpush1.msra.mxu0 0.0
      %700 = vmatprep.subr.mxu0 0.0
      %701 = vmatpush1.msra.mxu0 0.0
      %702 = vmatprep.subr.mxu0 0.0
      %703 = vmatpush1.msra.mxu0 0.0
      %704 = vmatprep.subr.mxu0 0.0
      %705 = vmatpush1.msra.mxu0 0.0
      %706 = vmatprep.subr.mxu0 0.0
      %707 = vmatpush1.msra.mxu0 0.0
      %708 = vmatprep.subr.mxu0 0.0
      %709 = vmatpush1.msra.mxu0 0.0
      %710 = vmatprep.subr.mxu0 0.0
      %711 = vmatpush1.msra.mxu0 0.0
      %712 = vmatprep.subr.mxu0 0.0
      %713 = vmatpush1.msra.mxu0 0.0
      %714 = vmatprep.subr.mxu0 0.0
      %715 = vmatpush1.msra.mxu0 0.0
      %716 = vmatprep.subr.mxu0 0.0
      %717 = vmatpush1.msra.mxu0 0.0
      %718 = vmatprep.subr.mxu0 0.0
      %719 = vmatpush1.msra.mxu0 0.0
      %720 = vmatprep.subr.mxu0 0.0
      %721 = vmatpush1.msra.mxu0 0.0
      %722 = vmatprep.subr.mxu0 0.0
      %723 = vmatpush1.msra.mxu0 0.0
      %724 = vmatprep.subr.mxu0 0.0
      %725 = vmatpush1.msra.mxu0 0.0
      %726 = vmatprep.subr.mxu0 0.0
      %727 = vmatpush1.msra.mxu0 0.0
      %728 = vmatprep.subr.mxu0 0.0
      %729 = vmatpush1.msra.mxu0 0.0
      %730 = vmatprep.subr.mxu0 0.0
      %731 = vmatpush1.msra.mxu0 0.0
      %732 = vmatprep.subr.mxu0 0.0
      %733 = vmatpush1.msra.mxu0 0.0
      %734 = vmatprep.subr.mxu0 0.0
      %735 = vmatpush1.msra.mxu0 0.0
      %736 = vmatprep.subr.mxu0 0.0
      %737 = vmatpush1.msra.mxu0 0.0
      %738 = vmatprep.subr.mxu0 0.0
      %739 = vmatpush1.msra.mxu0 0.0
      %740 = vmatprep.subr.mxu0 0.0
      %741 = vmatpush1.msra.mxu0 0.0
      %742 = vmatprep.subr.mxu0 0.0
      %743 = vmatpush1.msra.mxu0 0.0
      %744 = vmatprep.subr.mxu0 0.0
      %745 = vmatpush1.msra.mxu0 0.0
      %746 = vmatprep.subr.mxu0 0.0
      %747 = vmatpush1.msra.mxu0 0.0
      %748 = vmatprep.subr.mxu0 0.0
      %749 = vmatpush1.msra.mxu0 0.0
      %750 = vmatprep.subr.mxu0 0.0
      %751 = vmatpush1.msra.mxu0 0.0
      %752 = vmatprep.subr.mxu0 0.0
      %753 = vmatpush1.msra.mxu0 0.0
      %754 = vmatprep.mubr.f32.mxu0 0.0
      %755 = vmatmul.mubr.f32.gmra.mrb[0].mxu0 %v686
      %v756 = vpop.f32.mrb[0].mxu0
      %v757 = vadd.f32 %v678, %v756
      %v758 = vpop.f32.mrb[0].mxu0
      %759 = vmatprep.mubr.f32.mxu0 0.0
      %760 = vmatmul.mubr.f32.gmra.mrb[0].mxu0 %v688
      %v761 = vpop.f32.mrb[0].mxu0
      %v762 = vadd.f32 %v683, %v761
      %v763 = vpop.f32.mrb[0].mxu0
      %764 = vdwg.mxu0
      %s765 = scalar_lea.vmem %s3, 16
      %v766 = vld [vmem:[%s765] sm:$0xff]
      %v767 = vrot.slane %v593, 2
      %v768 = vrot.slane %v594, 2
      %v769 = vsel %vm460, %v767, %v768
      %v770 = vrot.slane %v595, 2
      %v771 = vsel %vm460, %v768, %v770
      %v772 = vsel %vm285, %v769, 0
      %v774 = vsel %vm285, %v771, 0
      %776 = vmatprep.subr.mxu0 0.0
      %777 = vmatpush1.msra.mxu0 %v766
      %778 = vmatprep.subr.mxu0 0.0
      %779 = vmatpush1.msra.mxu0 0.0
      %780 = vmatprep.subr.mxu0 0.0
      %781 = vmatpush1.msra.mxu0 0.0
      %782 = vmatprep.subr.mxu0 0.0
      %783 = vmatpush1.msra.mxu0 0.0
      %784 = vmatprep.subr.mxu0 0.0
      %785 = vmatpush1.msra.mxu0 0.0
      %786 = vmatprep.subr.mxu0 0.0
      %787 = vmatpush1.msra.mxu0 0.0
      %788 = vmatprep.subr.mxu0 0.0
      %789 = vmatpush1.msra.mxu0 0.0
      %790 = vmatprep.subr.mxu0 0.0
      %791 = vmatpush1.msra.mxu0 0.0
      %792 = vmatprep.subr.mxu0 0.0
      %793 = vmatpush1.msra.mxu0 0.0
      %794 = vmatprep.subr.mxu0 0.0
      %795 = vmatpush1.msra.mxu0 0.0
      %796 = vmatprep.subr.mxu0 0.0
      %797 = vmatpush1.msra.mxu0 0.0
      %798 = vmatprep.subr.mxu0 0.0
      %799 = vmatpush1.msra.mxu0 0.0
      %800 = vmatprep.subr.mxu0 0.0
      %801 = vmatpush1.msra.mxu0 0.0
      %802 = vmatprep.subr.mxu0 0.0
      %803 = vmatpush1.msra.mxu0 0.0
      %804 = vmatprep.subr.mxu0 0.0
      %805 = vmatpush1.msra.mxu0 0.0
      %806 = vmatprep.subr.mxu0 0.0
      %807 = vmatpush1.msra.mxu0 0.0
      %808 = vmatprep.subr.mxu0 0.0
      %809 = vmatpush1.msra.mxu0 0.0
      %810 = vmatprep.subr.mxu0 0.0
      %811 = vmatpush1.msra.mxu0 0.0
      %812 = vmatprep.subr.mxu0 0.0
      %813 = vmatpush1.msra.mxu0 0.0
      %814 = vmatprep.subr.mxu0 0.0
      %815 = vmatpush1.msra.mxu0 0.0
      %816 = vmatprep.subr.mxu0 0.0
      %817 = vmatpush1.msra.mxu0 0.0
      %818 = vmatprep.subr.mxu0 0.0
      %819 = vmatpush1.msra.mxu0 0.0
      %820 = vmatprep.subr.mxu0 0.0
      %821 = vmatpush1.msra.mxu0 0.0
      %822 = vmatprep.subr.mxu0 0.0
      %823 = vmatpush1.msra.mxu0 0.0
      %824 = vmatprep.subr.mxu0 0.0
      %825 = vmatpush1.msra.mxu0 0.0
      %826 = vmatprep.subr.mxu0 0.0
      %827 = vmatpush1.msra.mxu0 0.0
      %828 = vmatprep.subr.mxu0 0.0
      %829 = vmatpush1.msra.mxu0 0.0
      %830 = vmatprep.subr.mxu0 0.0
      %831 = vmatpush1.msra.mxu0 0.0
      %832 = vmatprep.subr.mxu0 0.0
      %833 = vmatpush1.msra.mxu0 0.0
      %834 = vmatprep.subr.mxu0 0.0
      %835 = vmatpush1.msra.mxu0 0.0
      %836 = vmatprep.subr.mxu0 0.0
      %837 = vmatpush1.msra.mxu0 0.0
      %838 = vmatprep.subr.mxu0 0.0
      %839 = vmatpush1.msra.mxu0 0.0
      %840 = vmatprep.mubr.f32.mxu0 0.0
      %841 = vmatmul.mubr.f32.gmra.mrb[0].mxu0 %v772
      %v842 = vpop.f32.mrb[0].mxu0
      %v843 = vadd.f32 0.0, %v842
      %v844 = vpop.f32.mrb[0].mxu0
      %845 = vmatprep.mubr.f32.mxu0 0.0
      %846 = vmatmul.mubr.f32.gmra.mrb[0].mxu0 %v774
      %v847 = vpop.f32.mrb[0].mxu0
      %v848 = vadd.f32 0.0, %v847
      %v849 = vpop.f32.mrb[0].mxu0
      %850 = vdwg.mxu0
      %v851 = vadd.f32 %v757, %v843
      %v852 = vadd.f32 %v762, %v848
      %v853 = vld [vmem:[%s4] sm:$0x1]
      %v855 = vlaneseq
      %v856 = vshrl.u32 %v855, 7
      %v857 = vsub.s32 0, %v856
      %v858 = vrot.slane %v853, %v857
      %v860 = vadd.f32 %v851, %v858
      %v861 = vadd.f32 %v852, %v858
      %v862 = vld [vmem:[%s251 + $0x2] sm:$0xff]
      %v863 = vld [vmem:[%s251 + $0xa] sm:$0xff]
      %v864 = vadd.f32 %v860, %v862
      %v865 = vadd.f32 %v861, %v863
      %866 = vst.msk [vmem:[%s260] sm:$0xff] %vm285, %v864
      %867 = vst.msk [vmem:[%s260 + $0x8] sm:$0xff] %vm285, %v865
      %p868 = scmp.lt.s32.totalorder %s20, 1
      %s869 = scalar_select %p868, %s20, 1
      %p870 = scmp.lt.s32.totalorder %s21, 2
      %s871 = scalar_select %p870, %s21, 2
      %s872 = smul.addr %s871, 2
      %s873 = smul.addr %s869, 6
      %s874 = sadd.s32 %s872, %s873
      %s875 = smul.addr %s874, 8
      %s876 = scalar_lea.vmem %s5, %s875
      // Predicated region
      $region41: #{tpu_custom_call.1} parent=39 // pred_check
        %p877 = pneg %p160
      $region42: #{tpu_custom_call.1} parent=39 // pred_check_branch
        %879 = sbr.rel (%p877) target = $region44
      $region43: #{tpu_custom_call.1} parent=39 // pred_region
        _
      $region44: #{tpu_custom_call.1} parent=39 // pred_fallthru
        _
    $region40: #{tpu_custom_call.1} parent=5 // pred_fallthru
      _
    %p880 = scmp.le.s32.totalorder 2, %s11
    // Predicated region
    $region45: #{tpu_custom_call.1} parent=5 // pred_check
      %p881 = pneg %p880
    $region46: #{tpu_custom_call.1} parent=5 // pred_check_branch
      %883 = sbr.rel (%p881) target = $region48
    $region47: #{tpu_custom_call.1} parent=5 // pred_region
      %s884 = ssub.s32 %s11, 2
      // Predicated region
      $region49: #{tpu_custom_call.1} parent=47 // pred_check
        %p885 = pneg %p166
      $region50: #{tpu_custom_call.1} parent=47 // pred_check_branch
        %887 = sbr.rel (%p885) target = $region52
      $region51: #{tpu_custom_call.1} parent=47 // pred_region
        %p888 = scmp.lt.s32.totalorder %s22, 1
        %s889 = scalar_select %p888, %s22, 1
        %p890 = scmp.lt.s32.totalorder %s23, 2
        %s891 = scalar_select %p890, %s23, 2
        %s892 = smul.addr %s891, 2
        %s893 = smul.addr %s889, 6
        %s894 = sadd.s32 %s892, %s893
        %s895 = smul.addr %s894, 8
        %s896 = scalar_lea.vmem %s5, %s895
      $region52: #{tpu_custom_call.1} parent=47 // pred_fallthru
        _
    $region48: #{tpu_custom_call.1} parent=5 // pred_fallthru
      _
  $region6: #{tpu_custom_call.1} parent=0 // loop_footer
    %s15 = sadd.s32 1, %s11
  $region7: #{tpu_custom_call.1} parent=0 // loop_footer_branch
    %10 = sbr.rel target = $region3
  $region8: #{tpu_custom_call.1} parent=0 // loop_exit
    _

</llo_original>
